<compile_context>
chip_gen: v7x
topology: tpu7x:2x2x1
jax: 0.10.0
libtpu: 0.0.40
codegen_flags: <defaults>
</compile_context>

<pallas_src>
import functools
import math

import jax
import jax.numpy as jnp
from jax import lax
from jax.experimental import pallas as pl
from jax.experimental.pallas import tpu as pltpu


def _cosface_kernel(x_ref, w_ref, lab_ref, o_ref, *, s, m, tile_c, matmul_dtype):
    # F.normalize(..., eps=1e-12): x / max(||x||, eps) == x * rsqrt(max(||x||^2, eps^2))
    eps2 = jnp.float32(1e-24)

    # Row-normalize the streamed weight tile (f32).
    w = w_ref[...].astype(jnp.float32)                                   # (TILE_C, D)
    w_n = w * lax.rsqrt(jnp.maximum(jnp.sum(w * w, axis=-1, keepdims=True), eps2))

    # Row-normalize the (small) activation tile (f32).
    x = x_ref[...].astype(jnp.float32)                                   # (TILE_B, D)
    x_n = x * lax.rsqrt(jnp.maximum(jnp.sum(x * x, axis=-1, keepdims=True), eps2))

    # cosine = x_n @ w_n.T without an explicit transpose: contract both
    # operands on their last dim. bf16 MXU inputs, f32 accumulator.
    cosine = lax.dot_general(
        x_n.astype(matmul_dtype),
        w_n.astype(matmul_dtype),
        dimension_numbers=(((1,), (1,)), ((), ())),
        preferred_element_type=jnp.float32,
    )                                                                    # (TILE_B, TILE_C)

    # one_hot(label) restricted to this class tile, then margin + scale.
    lab = lab_ref[...]                                                   # (TILE_B, 1) int32
    col0 = pl.program_id(1) * tile_c
    class_ids = col0 + lax.broadcasted_iota(jnp.int32, cosine.shape, 1)
    one_hot = class_ids == lab
    out = jnp.where(one_hot, cosine - jnp.float32(m), cosine) * jnp.float32(s)
    o_ref[...] = out.astype(o_ref.dtype)


def _rup(v, mult):
    return ((v + mult - 1) // mult) * mult


def cosface_forward(x, weight, label, *, s=30.0, m=0.3,
                    tile_b=256, tile_c=512, matmul_dtype=jnp.bfloat16):
    """x: (B, D) float, weight: (C, D) float, label: (B,) int -> (B, C) float32."""
    B, D = x.shape
    C, Dw = weight.shape
    assert D == Dw

    # Lane/sublane-aligned tiling. D stays whole (per-row norms need the full
    # feature dim); zero padding is norm- and dot-neutral, padded rows/classes
    # are sliced off at the end.
    TILE_B = min(tile_b, _rup(B, 8))
    TILE_C = min(tile_c, _rup(C, 128))
    B_pad = _rup(B, TILE_B)
    C_pad = _rup(C, TILE_C)
    D_pad = _rup(D, 128)

    x_p = jnp.zeros((B_pad, D_pad), jnp.float32).at[:B, :D].set(x.astype(jnp.float32))
    w_p = jnp.zeros((C_pad, D_pad), jnp.float32).at[:C, :D].set(weight.astype(jnp.float32))
    lab_p = jnp.zeros((B_pad, 1), jnp.int32).at[:B, 0].set(label.astype(jnp.int32))
    # TODO(synk): for very large B, label could live in SMEM / scalar prefetch
    # instead of a (TILE_B, 1) VMEM block; kept in VMEM for simple vector compare.

    grid = (B_pad // TILE_B, C_pad // TILE_C)

    # Explicit VMEM budget: double-buffered blocks + headroom (f32 tiles).
    blk_bytes = 2 * 4 * (TILE_C * D_pad + TILE_B * D_pad + TILE_B + TILE_B * TILE_C)
    vmem_limit = max(2 * blk_bytes + (16 << 20), 32 << 20)

    kernel = functools.partial(
        _cosface_kernel, s=s, m=m, tile_c=TILE_C, matmul_dtype=matmul_dtype)

    out = pl.pallas_call(
        kernel,
        grid=grid,
        in_specs=[
            pl.BlockSpec((TILE_B, D_pad), lambda i, j: (i, 0)),   # activations
            pl.BlockSpec((TILE_C, D_pad), lambda i, j: (j, 0)),   # streamed weights
            pl.BlockSpec((TILE_B, 1), lambda i, j: (i, 0)),       # labels
        ],
        out_specs=pl.BlockSpec((TILE_B, TILE_C), lambda i, j: (i, j)),
        out_shape=jax.ShapeDtypeStruct((B_pad, C_pad), jnp.float32),
        compiler_params=pltpu.CompilerParams(
            dimension_semantics=("parallel", "parallel"),
            vmem_limit_bytes=int(vmem_limit),
        ),
    )(x_p, w_p, lab_p)

    return out[:B, :C]


def _xavier_uniform(key, out_features, in_features):
    # Matches nn.init.xavier_uniform_ for a 2D (out, in) tensor.
    bound = math.sqrt(6.0 / (in_features + out_features))
    return jax.random.uniform(
        key, (out_features, in_features), jnp.float32, minval=-bound, maxval=bound
    )


def _reference(x, weight, label, s=30.0, m=0.3):
    eps = 1e-12
    x_n = x / jnp.maximum(jnp.linalg.norm(x, axis=1, keepdims=True), eps)
    w_n = weight / jnp.maximum(jnp.linalg.norm(weight, axis=1, keepdims=True), eps)
    cosine = x_n @ w_n.T
    phi = cosine - m
    one_hot = jax.nn.one_hot(label, weight.shape[0], dtype=jnp.float32)
    return s * (one_hot * phi + (1.0 - one_hot) * cosine)


if __name__ == "__main__":
    # Small shapes that still exercise a 3x2 grid (batch tiles x class tiles).
    B, D, C = 24, 32, 200  # batch, in_features, out_features
    key = jax.random.PRNGKey(0)
    kx, kw, kl = jax.random.split(key, 3)

    x = jax.random.normal(kx, (B, D), jnp.float32)
    weight = _xavier_uniform(kw, C, D)
    label = jax.random.randint(kl, (B,), 0, C, jnp.int32)

    out = cosface_forward(x, weight, label, s=30.0, m=0.3, tile_b=8, tile_c=128)
    out = jax.block_until_ready(out)

    ref = _reference(x, weight, label, s=30.0, m=0.3)
    assert out.shape == (B, C)
    # bf16 MXU inputs (f32 accumulation) -> tolerance on s-scaled cosines.
    assert jnp.allclose(out, ref, atol=0.15, rtol=0.02), (
        f"max abs err {jnp.max(jnp.abs(out - ref))}"
    )
    print("KERNEL_OK")
</pallas_src>

<mosaic_0001>
module attributes {stable_mosaic.version = 11 : i64} {
  func.func @_cosface_kernel(%arg0: i32, %arg1: i32, %arg2: memref<8x128xf32, #tpu.memory_space<vmem>>, %arg3: memref<128x128xf32, #tpu.memory_space<vmem>>, %arg4: memref<8x1xi32, #tpu.memory_space<vmem>>, %arg5: memref<8x128xf32, #tpu.memory_space<vmem>>) attributes {dimension_semantics = [#tpu.dimension_semantics<parallel>, #tpu.dimension_semantics<parallel>], iteration_bounds = array<i64: 3, 2>, scalar_prefetch = 0 : i64, scratch_operands = 0 : i64, tpu.core_type = #tpu.core_type<tc>, window_params = [{transform_indices = @transform_0, window_bounds = array<i64: 8, 128>}, {transform_indices = @transform_1, window_bounds = array<i64: 128, 128>}, {transform_indices = @transform_2, window_bounds = array<i64: 8, 1>}, {transform_indices = @transform_3, window_bounds = array<i64: 8, 128>}]} {
    %c0 = arith.constant 0 : index
    %c0_0 = arith.constant 0 : index
    %0 = vector.load %arg3[%c0, %c0_0] : memref<128x128xf32, #tpu.memory_space<vmem>>, vector<128x128xf32>
    %1 = arith.mulf %0, %0 : vector<128x128xf32>
    %cst = arith.constant dense<0.000000e+00> : vector<128xf32>
    %2 = vector.multi_reduction <add>, %1, %cst [1] : vector<128x128xf32> to vector<128xf32>
    %3 = vector.shape_cast %2 : vector<128xf32> to vector<128x1xf32>
    %cst_1 = arith.constant 1.000000e-24 : f32
    %4 = vector.broadcast %cst_1 : f32 to vector<128x1xf32>
    %5 = arith.maximumf %3, %4 : vector<128x1xf32>
    %6 = math.rsqrt %5 : vector<128x1xf32>
    %7 = vector.broadcast %6 : vector<128x1xf32> to vector<128x128xf32>
    %8 = arith.mulf %0, %7 : vector<128x128xf32>
    %c0_2 = arith.constant 0 : index
    %c0_3 = arith.constant 0 : index
    %9 = vector.load %arg2[%c0_2, %c0_3] : memref<8x128xf32, #tpu.memory_space<vmem>>, vector<8x128xf32>
    %10 = arith.mulf %9, %9 : vector<8x128xf32>
    %cst_4 = arith.constant dense<0.000000e+00> : vector<8xf32>
    %11 = vector.multi_reduction <add>, %10, %cst_4 [1] : vector<8x128xf32> to vector<8xf32>
    %12 = vector.shape_cast %11 : vector<8xf32> to vector<8x1xf32>
    %cst_5 = arith.constant 1.000000e-24 : f32
    %13 = vector.broadcast %cst_5 : f32 to vector<8x1xf32>
    %14 = arith.maximumf %12, %13 : vector<8x1xf32>
    %15 = math.rsqrt %14 : vector<8x1xf32>
    %16 = vector.broadcast %15 : vector<8x1xf32> to vector<8x128xf32>
    %17 = arith.mulf %9, %16 : vector<8x128xf32>
    %18 = arith.truncf %17 : vector<8x128xf32> to vector<8x128xbf16>
    %19 = arith.truncf %8 : vector<128x128xf32> to vector<128x128xbf16>
    %cst_6 = arith.constant dense<0.000000e+00> : vector<8x128xf32>
    %20 = tpu.matmul %18, %19, %cst_6 {dimension_numbers = #tpu.dot_dimension_numbers<[1], [1], [0], [0], [0, 0, 1, 0], [], []>} : vector<8x128xbf16>, vector<128x128xbf16>, vector<8x128xf32> -> vector<8x128xf32>
    %c0_7 = arith.constant 0 : index
    %c0_8 = arith.constant 0 : index
    %21 = vector.load %arg4[%c0_7, %c0_8] : memref<8x1xi32, #tpu.memory_space<vmem>>, vector<8x1xi32>
    %c128_i32 = arith.constant 128 : i32
    %22 = arith.muli %arg1, %c128_i32 : i32
    %23 = tpu.iota {dimensions = array<i32: 1>} : vector<8x128xi32>
    %24 = vector.broadcast %22 : i32 to vector<8x128xi32>
    %25 = arith.addi %24, %23 : vector<8x128xi32>
    %26 = vector.broadcast %21 : vector<8x1xi32> to vector<8x128xi32>
    %27 = arith.cmpi eq, %25, %26 : vector<8x128xi32>
    %cst_9 = arith.constant 3.000000e-01 : f32
    %28 = vector.broadcast %cst_9 : f32 to vector<8x128xf32>
    %29 = arith.subf %20, %28 : vector<8x128xf32>
    %30 = arith.select %27, %29, %20 : vector<8x128xi1>, vector<8x128xf32>
    %cst_10 = arith.constant 3.000000e+01 : f32
    %31 = vector.broadcast %cst_10 : f32 to vector<8x128xf32>
    %32 = arith.mulf %30, %31 : vector<8x128xf32>
    %c0_11 = arith.constant 0 : index
    %c0_12 = arith.constant 0 : index
    %33 = vector.load %arg5[%c0_11, %c0_12] : memref<8x128xf32, #tpu.memory_space<vmem>>, vector<8x128xf32>
    tpu.vector_store %arg5[%c0_11, %c0_12], %32 {strides = array<i32>} : memref<8x128xf32, #tpu.memory_space<vmem>>, vector<8x128xf32>,
    return
  }
  func.func @transform_0(%arg0: i32, %arg1: i32) -> (i32, i32) {
    %c0_i32 = arith.constant 0 : i32
    %c0_i32_0 = arith.constant 0 : i32
    return %arg0, %c0_i32 : i32, i32
  }
  func.func @transform_1(%arg0: i32, %arg1: i32) -> (i32, i32) {
    %c0_i32 = arith.constant 0 : i32
    %c0_i32_0 = arith.constant 0 : i32
    return %arg1, %c0_i32 : i32, i32
  }
  func.func @transform_2(%arg0: i32, %arg1: i32) -> (i32, i32) {
    %c0_i32 = arith.constant 0 : i32
    %c0_i32_0 = arith.constant 0 : i32
    return %arg0, %c0_i32 : i32, i32
  }
  func.func @transform_3(%arg0: i32, %arg1: i32) -> (i32, i32) {
    %c0_i32 = arith.constant 0 : i32
    return %arg0, %arg1 : i32, i32
  }
}

</mosaic_0001>

<llo_original>
// kernel: tpu_custom_call.1
$region0: #{tpu_custom_call.1}
  #allocation0 [shape = 'u32[]', space=smem, size = 0x4, offset = 0x4, fixed_abs, tag = 'smem constant byte address 0x4 - core index']
  #allocation1 [shape = 'u32[144,128]{1,0:T(1,128)}', space=vmem, size = 0x12000, scoped, tag = 'internal scratch']
  %s0 = inlined_call_operand.vmem [shape: f32[24,128], index: 0, kind: input, shape index: {}]
  %s1 = inlined_call_operand.hbm [shape: f32[256,128], index: 1, kind: input, shape index: {}]
  %s2 = inlined_call_operand.vmem [shape: s32[24,1], index: 2, kind: input, shape index: {}]
  %s3 = inlined_call_operand.hbm [shape: f32[24,256], index: 3, kind: output, shape index: {}]
  %s4 = sld [smem:[#allocation0]]
  $region49: #{tpu_custom_call.1} parent=0
    _
  %s6 = ssub.s32 1, %s4
  %s7 = scalar_select 0, %s6, %s4
  $region1: #{tpu_custom_call.1} parent=0
    #allocation2 [shape = 'u8[131072]{0}', space=vmem, size = 0x20000, scoped, tag = 'input window, operand 1']
    #allocation3 [shape = 's32[2]{0}', space=sflag, size = 0x8, scoped, tag = 'scoped memory for tpu_custom_call.1']
    #allocation4 [shape = 's32[2]{0}', space=sflag, size = 0x8, scoped, tag = 'scoped memory for tpu_custom_call.1']
    #allocation5 [shape = 'u8[8192]{0}', space=vmem, size = 0x2000, scoped, tag = 'output window, operand 0']
    %8 = vsyncpa [#allocation3], 0
    %s9 = scalar_lea.sflag [#allocation3], 1
    %10 = vsyncpa %s9, 0
    %11 = vsyncpa [#allocation4], 0
    %s12 = scalar_lea.sflag [#allocation4], 1
    %13 = vsyncpa %s12, 0
    loop: start=0, step=1, limit=8
    $region2: #{tpu_custom_call.1} parent=1 // loop_pre_header
      _
    $region3: #{tpu_custom_call.1} parent=1 // loop_header
      %s15 = sphi 0, %s19
      %p16 = scmp.ge.s32.totalorder %s15, 8
      %s22 = sphi 0, %s34
      %s23 = sphi 0, %s30
      %s24 = sphi 0, %s22
      %s25 = sphi 0, %s23
      %s26 = sphi 0, %s24
      %s27 = sphi 0, %s25
      %s37 = sphi 0, %s39
      %s40 = sphi 0, %s37
      %s41 = sphi 0, %s40
      %s57 = sphi 0, %s41
      %s63 = sphi 0, %s65
      %s66 = sphi 0, %s63
      %s67 = sphi 0, %s66
      %s83 = sphi 0, %s67
      %s89 = sphi 0, %s91
      %s92 = sphi 0, %s89
      %s93 = sphi 0, %s92
      %s109 = sphi 0, %s93
      %s117 = sphi 0, %s119
      %s120 = sphi 0, %s117
      %s121 = sphi 0, %s120
      %s137 = sphi 0, %s121
    $region4: #{tpu_custom_call.1} parent=1 // loop_header_branch
      %18 = sbr.rel (%p16) target = $region8
    $region5: #{tpu_custom_call.1} parent=1 // loop_body
      %s20 = ssub.s32 %s15, 1
      %s21 = ssub.s32 %s15, 2
      %s28 = sadd.s32 1, %s23
      %p29 = scmp.ge.s32.totalorder %s28, 2
      %s30 = scalar_select %p29, 0, %s28
      %s31 = sadd.s32 1, %s22
      %s32 = scalar_select %p29, %s31, %s22
      %p33 = scmp.ge.s32.totalorder %s32, 3
      %s34 = scalar_select %p33, 0, %s32
      %s35 = ssub.s32 %s22, %s34
      %p36 = scmp.eq.s32.totalorder %s35, 0
      %s38 = sadd.s32 %s37, 1
      %s39 = scalar_select %p36, %s37, %s38
      %p42 = pneg %p36
      %p43 = scmp.eq.s32.totalorder %s15, 5
      %p44 = por %p42, %p43
      %p45 = scmp.ne.s32.totalorder %s37, %s40
      %p46 = scmp.eq.s32.totalorder %s15, 0
      %p47 = por %p45, %p46
      %p48 = scmp.ne.s32.totalorder %s37, %s40
      %p49 = scmp.eq.s32.totalorder %s20, 5
      %p50 = por %p48, %p49
      %p51 = scmp.ne.s32.totalorder %s40, %s41
      %p52 = scmp.eq.s32.totalorder %s20, 0
      %p53 = por %p51, %p52
      %p54 = scmp.ne.s32.totalorder %s40, %s41
      %p55 = scmp.eq.s32.totalorder %s21, 5
      %p56 = por %p54, %p55
      %p58 = scmp.ne.s32.totalorder %s41, %s57
      %p59 = scmp.eq.s32.totalorder %s21, 0
      %p60 = por %p58, %p59
      %s61 = ssub.s32 %s23, %s30
      %p62 = scmp.eq.s32.totalorder %s61, 0
      %s64 = sadd.s32 %s63, 1
      %s65 = scalar_select %p62, %s63, %s64
      %p68 = pneg %p62
      %p69 = scmp.eq.s32.totalorder %s15, 5
      %p70 = por %p68, %p69
      %p71 = scmp.ne.s32.totalorder %s63, %s66
      %p72 = scmp.eq.s32.totalorder %s15, 0
      %p73 = por %p71, %p72
      %p74 = scmp.ne.s32.totalorder %s63, %s66
      %p75 = scmp.eq.s32.totalorder %s20, 5
      %p76 = por %p74, %p75
      %p77 = scmp.ne.s32.totalorder %s66, %s67
      %p78 = scmp.eq.s32.totalorder %s20, 0
      %p79 = por %p77, %p78
      %p80 = scmp.ne.s32.totalorder %s66, %s67
      %p81 = scmp.eq.s32.totalorder %s21, 5
      %p82 = por %p80, %p81
      %p84 = scmp.ne.s32.totalorder %s67, %s83
      %p85 = scmp.eq.s32.totalorder %s21, 0
      %p86 = por %p84, %p85
      %s87 = ssub.s32 %s22, %s34
      %p88 = scmp.eq.s32.totalorder %s87, 0
      %s90 = sadd.s32 %s89, 1
      %s91 = scalar_select %p88, %s89, %s90
      %p94 = pneg %p88
      %p95 = scmp.eq.s32.totalorder %s15, 5
      %p96 = por %p94, %p95
      %p97 = scmp.ne.s32.totalorder %s89, %s92
      %p98 = scmp.eq.s32.totalorder %s15, 0
      %p99 = por %p97, %p98
      %p100 = scmp.ne.s32.totalorder %s89, %s92
      %p101 = scmp.eq.s32.totalorder %s20, 5
      %p102 = por %p100, %p101
      %p103 = scmp.ne.s32.totalorder %s92, %s93
      %p104 = scmp.eq.s32.totalorder %s20, 0
      %p105 = por %p103, %p104
      %p106 = scmp.ne.s32.totalorder %s92, %s93
      %p107 = scmp.eq.s32.totalorder %s21, 5
      %p108 = por %p106, %p107
      %p110 = scmp.ne.s32.totalorder %s93, %s109
      %p111 = scmp.eq.s32.totalorder %s21, 0
      %p112 = por %p110, %p111
      %s113 = ssub.s32 %s22, %s34
      %s114 = ssub.s32 %s23, %s30
      %s115 = sor.u32 %s113, %s114
      %p116 = scmp.eq.s32.totalorder %s115, 0
      %s118 = sadd.s32 %s117, 1
      %s119 = scalar_select %p116, %s117, %s118
      %p122 = pneg %p116
      %p123 = scmp.eq.s32.totalorder %s15, 5
      %p124 = por %p122, %p123
      %p125 = scmp.ne.s32.totalorder %s117, %s120
      %p126 = scmp.eq.s32.totalorder %s15, 0
      %p127 = por %p125, %p126
      %p128 = scmp.ne.s32.totalorder %s117, %s120
      %p129 = scmp.eq.s32.totalorder %s20, 5
      %p130 = por %p128, %p129
      %p131 = scmp.ne.s32.totalorder %s120, %s121
      %p132 = scmp.eq.s32.totalorder %s20, 0
      %p133 = por %p131, %p132
      %p134 = scmp.ne.s32.totalorder %s120, %s121
      %p135 = scmp.eq.s32.totalorder %s21, 5
      %p136 = por %p134, %p135
      %p138 = scmp.ne.s32.totalorder %s121, %s137
      %p139 = scmp.eq.s32.totalorder %s21, 0
      %p140 = por %p138, %p139
      %p141 = scmp.le.s32.totalorder 1, %s15
      %p142 = scmp.lt.s32.totalorder %s15, 7
      %p143 = pnand %p141, %p142
      %p144 = pneg %p143
      // Predicated region
      $region9: #{tpu_custom_call.1} parent=5 // pred_check
        _
      $region10: #{tpu_custom_call.1} parent=5 // pred_check_branch
        %146 = sbr.rel (%p143) target = $region12
      $region11: #{tpu_custom_call.1} parent=5 // pred_region
        %s147 = ssub.s32 %s15, 1
      $region12: #{tpu_custom_call.1} parent=5 // pred_fallthru
        _
      %p148 = scmp.lt.s32.totalorder %s15, 6
      // Predicated region
      $region13: #{tpu_custom_call.1} parent=5 // pred_check
        %p149 = pneg %p148
      $region14: #{tpu_custom_call.1} parent=5 // pred_check_branch
        %151 = sbr.rel (%p149) target = $region16
      $region15: #{tpu_custom_call.1} parent=5 // pred_region
        // Predicated region
        $region17: #{tpu_custom_call.1} parent=15 // pred_check
          %p152 = pneg %p47
        $region18: #{tpu_custom_call.1} parent=15 // pred_check_branch
          %154 = sbr.rel (%p152) target = $region20
        $region19: #{tpu_custom_call.1} parent=15 // pred_region
          %p155 = scmp.lt.s32.totalorder %s22, 2
          %s156 = scalar_select %p155, %s22, 2
          %s157 = smul.addr %s156, 8
          %s158 = scalar_lea.vmem %s0, %s157
        $region20: #{tpu_custom_call.1} parent=15 // pred_fallthru
          _
        // Predicated region
        $region21: #{tpu_custom_call.1} parent=15 // pred_check
          %p159 = pneg %p73
        $region22: #{tpu_custom_call.1} parent=15 // pred_check_branch
          %161 = sbr.rel (%p159) target = $region24
        $region23: #{tpu_custom_call.1} parent=15 // pred_region
          %s162 = sand.u32 %s63, 1
          %s163 = scalar_lea.sflag [#allocation3], %s162
          %s164 = sand.u32 %s63, 1
          %s165 = smul.addr %s164, 128
          %s166 = scalar_lea.vmem [#allocation2], %s165
          %s167 = smul.u32 16, %s23
          %s169 = ssub.s32 2048, 2048
          %170 = vsyncadd %s163, %s169
          %s171 = smul.addr %s167, 128
          %s172 = scalar_lea.hbm %s1, %s171
          %s173 = sshll.u32 %s166, 4
          %s174 = int_to_ptr.vmem [resolvable:$true] %s173
          %179 = dma.hbm_to_vmem [thread:$0]  %s172, 2048, %s174, %s163, 128, 128, 8
        $region24: #{tpu_custom_call.1} parent=15 // pred_fallthru
          _
        // Predicated region
        $region25: #{tpu_custom_call.1} parent=15 // pred_check
          %p180 = pneg %p99
        $region26: #{tpu_custom_call.1} parent=15 // pred_check_branch
          %182 = sbr.rel (%p180) target = $region28
        $region27: #{tpu_custom_call.1} parent=15 // pred_region
          %p183 = scmp.lt.s32.totalorder %s22, 2
          %s184 = scalar_select %p183, %s22, 2
          %s185 = smul.addr %s184, 8
          %s186 = scalar_lea.vmem %s2, %s185
        $region28: #{tpu_custom_call.1} parent=15 // pred_fallthru
          _
      $region16: #{tpu_custom_call.1} parent=5 // pred_fallthru
        _
      %p187 = scmp.le.s32.totalorder 1, %s15
      %p188 = scmp.lt.s32.totalorder %s15, 7
      %p189 = pnand %p187, %p188
      %p190 = pneg %p189
      // Predicated region
      $region29: #{tpu_custom_call.1} parent=5 // pred_check
        _
      $region30: #{tpu_custom_call.1} parent=5 // pred_check_branch
        %192 = sbr.rel (%p189) target = $region32
      $region31: #{tpu_custom_call.1} parent=5 // pred_region
        %s193 = ssub.s32 %s15, 1
        %s194 = sand.u32 %s66, 1
        %s195 = scalar_lea.sflag [#allocation3], %s194
        %s196 = sand.u32 %s66, 1
        %s197 = smul.addr %s196, 128
        %s198 = scalar_lea.vmem [#allocation2], %s197
        // Predicated region
        $region33: #{tpu_custom_call.1} parent=31 // pred_check
          %p199 = pneg %p79
        $region34: #{tpu_custom_call.1} parent=31 // pred_check_branch
          %201 = sbr.rel (%p199) target = $region36
        $region35: #{tpu_custom_call.1} parent=31 // pred_region
          %202 = dma.done %s195, 2048
        $region36: #{tpu_custom_call.1} parent=31 // pred_fallthru
          _
        %p203 = scmp.lt.s32.totalorder %s24, 2
        %s204 = scalar_select %p203, %s24, 2
        %s205 = smul.addr %s204, 8
        %s206 = scalar_lea.vmem %s0, %s205
        %p207 = pneg %p53
        %p208 = pneg %p50
        %s209 = sand.u32 %s66, 1
        %s210 = scalar_lea.sflag [#allocation3], %s209
        %s211 = sand.u32 %s66, 1
        %s212 = smul.addr %s211, 128
        %s213 = scalar_lea.vmem [#allocation2], %s212
        %p214 = pneg %p79
        %p215 = pneg %p76
        %p216 = scmp.lt.s32.totalorder %s24, 2
        %s217 = scalar_select %p216, %s24, 2
        %s218 = smul.addr %s217, 8
        %s219 = scalar_lea.vmem %s2, %s218
        %p220 = pneg %p105
        %p221 = pneg %p102
        %p222 = pneg %p133
        %p223 = pneg %p130
        %s224 = sand.u32 %s120, 1
        %s225 = scalar_lea.sflag [#allocation4], %s224
        %s226 = sand.u32 %s120, 1
        %s227 = smul.addr %s226, 8
        %s228 = scalar_lea.vmem [#allocation5], %s227
        %p229 = scmp.lt.s32.totalorder %s24, 2
        %s230 = scalar_select %p229, %s24, 2
        %s231 = smul.addr %s230, 8
        %s232 = scalar_lea.vmem %s0, %s231
        %s233 = smul.u32 16, %s25
        %p234 = scmp.lt.s32.totalorder %s24, 2
        %s235 = scalar_select %p234, %s24, 2
        %s236 = smul.addr %s235, 8
        %s237 = scalar_lea.vmem %s2, %s236
        %v239 = vld [vmem:[%s198] sm:$0xff]
        %v240 = vld [vmem:[%s198 + $0x8] sm:$0xff]
        %v241 = vld [vmem:[%s198 + $0x10] sm:$0xff]
        %v242 = vld [vmem:[%s198 + $0x18] sm:$0xff]
        %v243 = vld [vmem:[%s198 + $0x20] sm:$0xff]
        %v244 = vld [vmem:[%s198 + $0x28] sm:$0xff]
        %v245 = vld [vmem:[%s198 + $0x30] sm:$0xff]
        %v246 = vld [vmem:[%s198 + $0x38] sm:$0xff]
        %v247 = vld [vmem:[%s198 + $0x40] sm:$0xff]
        %v248 = vld [vmem:[%s198 + $0x48] sm:$0xff]
        %v249 = vld [vmem:[%s198 + $0x50] sm:$0xff]
        %v250 = vld [vmem:[%s198 + $0x58] sm:$0xff]
        %v251 = vld [vmem:[%s198 + $0x60] sm:$0xff]
        %v252 = vld [vmem:[%s198 + $0x68] sm:$0xff]
        %v253 = vld [vmem:[%s198 + $0x70] sm:$0xff]
        %v254 = vld [vmem:[%s198 + $0x78] sm:$0xff]
        %v255 = vmul.f32 %v239, %v239
        %v256 = vmul.f32 %v240, %v240
        %v257 = vmul.f32 %v241, %v241
        %v258 = vmul.f32 %v242, %v242
        %v259 = vmul.f32 %v243, %v243
        %v260 = vmul.f32 %v244, %v244
        %v261 = vmul.f32 %v245, %v245
        %v262 = vmul.f32 %v246, %v246
        %v263 = vmul.f32 %v247, %v247
        %v264 = vmul.f32 %v248, %v248
        %v265 = vmul.f32 %v249, %v249
        %v266 = vmul.f32 %v250, %v250
        %v267 = vmul.f32 %v251, %v251
        %v268 = vmul.f32 %v252, %v252
        %v269 = vmul.f32 %v253, %v253
        %v270 = vmul.f32 %v254, %v254
        %271 = vadd.xlane.f32.xlu0 %v255
        %v272 = vpop.xlane.xlu0 %271
        %273 = vadd.xlane.f32.xlu0 %v256
        %v274 = vpop.xlane.xlu0 %273
        %275 = vadd.xlane.f32.xlu0 %v257
        %v276 = vpop.xlane.xlu0 %275
        %277 = vadd.xlane.f32.xlu0 %v258
        %v278 = vpop.xlane.xlu0 %277
        %279 = vadd.xlane.f32.xlu0 %v259
        %v280 = vpop.xlane.xlu0 %279
        %281 = vadd.xlane.f32.xlu0 %v260
        %v282 = vpop.xlane.xlu0 %281
        %283 = vadd.xlane.f32.xlu0 %v261
        %v284 = vpop.xlane.xlu0 %283
        %285 = vadd.xlane.f32.xlu0 %v262
        %v286 = vpop.xlane.xlu0 %285
        %287 = vadd.xlane.f32.xlu0 %v263
        %v288 = vpop.xlane.xlu0 %287
        %289 = vadd.xlane.f32.xlu0 %v264
        %v290 = vpop.xlane.xlu0 %289
        %291 = vadd.xlane.f32.xlu0 %v265
        %v292 = vpop.xlane.xlu0 %291
        %293 = vadd.xlane.f32.xlu0 %v266
        %v294 = vpop.xlane.xlu0 %293
        %295 = vadd.xlane.f32.xlu0 %v267
        %v296 = vpop.xlane.xlu0 %295
        %297 = vadd.xlane.f32.xlu0 %v268
        %v298 = vpop.xlane.xlu0 %297
        %299 = vadd.xlane.f32.xlu0 %v269
        %v300 = vpop.xlane.xlu0 %299
        %301 = vadd.xlane.f32.xlu0 %v270
        %v302 = vpop.xlane.xlu0 %301
        %v303 = vmax.f32 %v272, 1e-24
        %v304 = vmax.f32 %v274, 1e-24
        %v305 = vmax.f32 %v276, 1e-24
        %v306 = vmax.f32 %v278, 1e-24
        %v307 = vmax.f32 %v280, 1e-24
        %v308 = vmax.f32 %v282, 1e-24
        %v309 = vmax.f32 %v284, 1e-24
        %v310 = vmax.f32 %v286, 1e-24
        %v311 = vmax.f32 %v288, 1e-24
        %v312 = vmax.f32 %v290, 1e-24
        %v313 = vmax.f32 %v292, 1e-24
        %v314 = vmax.f32 %v294, 1e-24
        %v315 = vmax.f32 %v296, 1e-24
        %v316 = vmax.f32 %v298, 1e-24
        %v317 = vmax.f32 %v300, 1e-24
        %v318 = vmax.f32 %v302, 1e-24
        %v319 = vrsqrt.pop %v303
        %v320 = vrsqrt.pop %v304
        %v321 = vrsqrt.pop %v305
        %v322 = vrsqrt.pop %v306
        %v323 = vrsqrt.pop %v307
        %v324 = vrsqrt.pop %v308
        %v325 = vrsqrt.pop %v309
        %v326 = vrsqrt.pop %v310
        %v327 = vrsqrt.pop %v311
        %v328 = vrsqrt.pop %v312
        %v329 = vrsqrt.pop %v313
        %v330 = vrsqrt.pop %v314
        %v331 = vrsqrt.pop %v315
        %v332 = vrsqrt.pop %v316
        %v333 = vrsqrt.pop %v317
        %v334 = vrsqrt.pop %v318
        %v335 = vmul.f32 %v239, %v319
        %v336 = vmul.f32 %v240, %v320
        %v337 = vmul.f32 %v241, %v321
        %v338 = vmul.f32 %v242, %v322
        %v339 = vmul.f32 %v243, %v323
        %v340 = vmul.f32 %v244, %v324
        %v341 = vmul.f32 %v245, %v325
        %v342 = vmul.f32 %v246, %v326
        %v343 = vmul.f32 %v247, %v327
        %v344 = vmul.f32 %v248, %v328
        %v345 = vmul.f32 %v249, %v329
        %v346 = vmul.f32 %v250, %v330
        %v347 = vmul.f32 %v251, %v331
        %v348 = vmul.f32 %v252, %v332
        %v349 = vmul.f32 %v253, %v333
        %v350 = vmul.f32 %v254, %v334
        %v351 = vld [vmem:[%s232] sm:$0xff]
        %v352 = vmul.f32 %v351, %v351
        %353 = vadd.xlane.f32.xlu0 %v352
        %v354 = vpop.xlane.xlu0 %353
        %v355 = vmax.f32 %v354, 1e-24
        %v356 = vrsqrt.pop %v355
        %v357 = vmul.f32 %v351, %v356
        %v358 = vpack.c.bf16 %v357, %v357
        %v359 = vpack.c.bf16 %v336, %v335
        %v360 = vpack.c.bf16 %v338, %v337
        %v361 = vpack.c.bf16 %v340, %v339
        %v362 = vpack.c.bf16 %v342, %v341
        %v363 = vpack.c.bf16 %v344, %v343
        %v364 = vpack.c.bf16 %v346, %v345
        %v365 = vpack.c.bf16 %v348, %v347
        %v366 = vpack.c.bf16 %v350, %v349
        %367 = vmatprep.subr.bf16.mxu0 0
        %368 = vmatpush1.bf16.xpose.msra.mxu0 %v359
        %369 = vmatprep.subr.bf16.mxu0 0
        %370 = vmatpush1.bf16.xpose.msra.mxu0 %v360
        %371 = vmatprep.subr.bf16.mxu0 0
        %372 = vmatpush1.bf16.xpose.msra.mxu0 %v361
        %373 = vmatprep.subr.bf16.mxu0 0
        %374 = vmatpush1.bf16.xpose.msra.mxu0 %v362
        %375 = vmatprep.subr.bf16.mxu0 0
        %376 = vmatpush1.bf16.xpose.msra.mxu0 %v363
        %377 = vmatprep.subr.bf16.mxu0 0
        %378 = vmatpush1.bf16.xpose.msra.mxu0 %v364
        %379 = vmatprep.subr.bf16.mxu0 0
        %380 = vmatpush1.bf16.xpose.msra.mxu0 %v365
        %381 = vmatprep.subr.bf16.mxu0 0
        %382 = vmatpush1.bf16.xpose.msra.mxu0 %v366
        %383 = vmatprep.subr.bf16.mxu0 0
        %384 = vmatpush1.bf16.xpose.msra.mxu0 0
        %385 = vmatprep.subr.bf16.mxu0 0
        %386 = vmatpush1.bf16.xpose.msra.mxu0 0
        %387 = vmatprep.subr.bf16.mxu0 0
        %388 = vmatpush1.bf16.xpose.msra.mxu0 0
        %389 = vmatprep.subr.bf16.mxu0 0
        %390 = vmatpush1.bf16.xpose.msra.mxu0 0
        %391 = vmatprep.subr.bf16.mxu0 0
        %392 = vmatpush1.bf16.xpose.msra.mxu0 0
        %393 = vmatprep.subr.bf16.mxu0 0
        %394 = vmatpush1.bf16.xpose.msra.mxu0 0
        %395 = vmatprep.subr.bf16.mxu0 0
        %396 = vmatpush1.bf16.xpose.msra.mxu0 0
        %397 = vmatprep.subr.bf16.mxu0 0
        %398 = vmatpush1.bf16.xpose.msra.mxu0 0
        %399 = vmatprep.mubr.bf16.mxu0 0
        %400 = vmatmul.mubr.bf16.gmra.mrb[0].mxu0 %v358
        %v401 = vpop.f32.mrb[0].mxu0
        %v402 = vadd.f32 0.0, %v401
        %v403 = vpop.f32.mrb[0].mxu0
        %v404 = vpop.f32.mrb[0].mxu0
        %v405 = vpop.f32.mrb[0].mxu0
        %406 = vdwg.mxu0
        %v407 = vld [vmem:[%s237] sm:$0xff]
        %s408 = smul.u32 %s25, 128
        %v409 = vlaneseq
        %v410 = vand.u32 %v409, 127
        %v411 = vstv %s408
        %v412 = vadd.s32 %v411, %v410
        %413 = vset.pattern.permute.xlu0 0
        %414 = vperm.xlu0 %413, %v407
        %v415 = vpop.permute.xlu0 %414
        %vm416 = vcmp.eq.s32.totalorder %v412, %v415
        %v417 = vsub.f32 %v402, 0.3
        %v418 = vsel %vm416, %v417, %v402
        %v419 = vmul.f32 %v418, 30.0
        %420 = vst [vmem:[%s228] sm:$0xff] %v419
        %s421 = sand.u32 %s120, 1
        %s422 = scalar_lea.sflag [#allocation4], %s421
        %s423 = sand.u32 %s120, 1
        %s424 = smul.addr %s423, 8
        %s425 = scalar_lea.vmem [#allocation5], %s424
        // Predicated region
        $region37: #{tpu_custom_call.1} parent=31 // pred_check
          %p426 = pneg %p130
        $region38: #{tpu_custom_call.1} parent=31 // pred_check_branch
          %428 = sbr.rel (%p426) target = $region40
        $region39: #{tpu_custom_call.1} parent=31 // pred_region
          %s430 = ssub.s32 128, 128
          %431 = vsyncadd %s422, %s430
          %s432 = smul.addr %s24, 2
          %s433 = sadd.s32 %s25, %s432
          %s434 = smul.addr %s433, 128
          %s435 = scalar_lea.hbm %s3, %s434
          %s437 = sshll.u32 %s425, 4
          %s438 = int_to_ptr.vmem [resolvable:$true] %s437
          %440 = dma.vmem_to_hbm [thread:$0]  %s438, 128, %s435, %s422
        $region40: #{tpu_custom_call.1} parent=31 // pred_fallthru
          _
      $region32: #{tpu_custom_call.1} parent=5 // pred_fallthru
        _
      %p441 = scmp.le.s32.totalorder 2, %s15
      // Predicated region
      $region41: #{tpu_custom_call.1} parent=5 // pred_check
        %p442 = pneg %p441
      $region42: #{tpu_custom_call.1} parent=5 // pred_check_branch
        %444 = sbr.rel (%p442) target = $region44
      $region43: #{tpu_custom_call.1} parent=5 // pred_region
        %s445 = ssub.s32 %s15, 2
        // Predicated region
        $region45: #{tpu_custom_call.1} parent=43 // pred_check
          %p446 = pneg %p136
        $region46: #{tpu_custom_call.1} parent=43 // pred_check_branch
          %448 = sbr.rel (%p446) target = $region48
        $region47: #{tpu_custom_call.1} parent=43 // pred_region
          %s449 = sand.u32 %s121, 1
          %s450 = scalar_lea.sflag [#allocation4], %s449
          %s451 = sand.u32 %s121, 1
          %s452 = smul.addr %s451, 8
          %s453 = scalar_lea.vmem [#allocation5], %s452
          %454 = dma.done %s450, 128
        $region48: #{tpu_custom_call.1} parent=43 // pred_fallthru
          _
      $region44: #{tpu_custom_call.1} parent=5 // pred_fallthru
        _
    $region6: #{tpu_custom_call.1} parent=1 // loop_footer
      %s19 = sadd.s32 1, %s15
    $region7: #{tpu_custom_call.1} parent=1 // loop_footer_branch
      %14 = sbr.rel target = $region3
    $region8: #{tpu_custom_call.1} parent=1 // loop_exit
      _
    %455 = vsyncpa [#allocation3], 1
    %s456 = scalar_lea.sflag [#allocation3], 1
    %457 = vsyncpa %s456, 1
    %458 = vsyncpa [#allocation4], 1
    %s459 = scalar_lea.sflag [#allocation4], 1
    %460 = vsyncpa %s459, 1

</llo_original>
